<compile_context>
chip_gen: v6e
topology: v6e:2x2x1
jax: 0.10.0
libtpu: 0.0.40
codegen_flags: <defaults>
</compile_context>

<pallas_src>
import jax
import jax.numpy as jnp
from jax.experimental import pallas as pl
from jax.experimental.pallas import tpu as pltpu


def _round_up(v, m):
    return ((v + m - 1) // m) * m


# ----------------------------- Pallas kernel -----------------------------
def _coupling_body(sign_ref, x_ref, w0_ref, b0_ref, wh_ref, bh_ref,
                   wl_ref, bl_ref, out_ref, n_hidden):
    """sign_ref: SMEM (1,) int32.  x_ref/out_ref: (TB, w) tiles.
    w0_ref: (w, mid_p) bf16, wh_ref: (n_hidden, mid_p, mid_p) bf16,
    wl_ref: (mid_p, w) bf16.  Biases are f32."""
    x = x_ref[...].astype(jnp.float32)            # lane-dense (TB, w) load

    # first layer: zero-scattered rows make  x @ W0e == x1 @ W0
    h = jnp.dot(x.astype(jnp.bfloat16), w0_ref[...],
                preferred_element_type=jnp.float32) + b0_ref[...]
    h = jnp.maximum(h, 0.0)

    for i in range(n_hidden):                     # statically unrolled hidden MLP
        h = jnp.dot(h.astype(jnp.bfloat16), wh_ref[i],
                    preferred_element_type=jnp.float32) + bh_ref[i]
        h = jnp.maximum(h, 0.0)

    # last layer: zero-scattered cols -> delta is already interleaved
    # (zeros on the x1 lanes, m(x1) on the x2 lanes)
    delta = jnp.dot(h.astype(jnp.bfloat16), wl_ref[...],
                    preferred_element_type=jnp.float32) + bl_ref[...]

    sign = sign_ref[0].astype(jnp.float32)        # +1 forward / -1 reverse
    out_ref[...] = (x + sign * delta).astype(out_ref.dtype)


def _make_coupling_kernel(n_hidden):
    if n_hidden > 0:
        def kernel(sign_ref, x_ref, w0_ref, b0_ref, wh_ref, bh_ref,
                   wl_ref, bl_ref, out_ref):
            _coupling_body(sign_ref, x_ref, w0_ref, b0_ref, wh_ref, bh_ref,
                           wl_ref, bl_ref, out_ref, n_hidden)
    else:
        def kernel(sign_ref, x_ref, w0_ref, b0_ref, wl_ref, bl_ref, out_ref):
            _coupling_body(sign_ref, x_ref, w0_ref, b0_ref, None, None,
                           wl_ref, bl_ref, out_ref, 0)
    return kernel


# ----------------------------- packing -----------------------------
def _pack_params(params, w_feat, mask_config):
    """Heterogeneous packing.  First/last layers are zero-scattered onto the
    interleaved lane positions; hidden layers stacked.  mid is padded only to
    the next multiple of 128 (exact zeros).  Weights -> bf16, biases -> f32."""
    assert len(params) >= 2, "AdditiveCoupling MLP always has >= 2 Linear layers"
    assert w_feat % 2 == 0, "feature dim must be even for even/odd coupling"
    mid = params[0][0].shape[1]
    for (W, _) in params[1:-1]:
        assert W.shape == (mid, mid), "hidden layers must share width mid"
    mid_p = _round_up(mid, 128)

    # first layer: rows -> x1 (mask_config) lane positions
    W0, b0 = params[0]
    W0e = jnp.zeros((w_feat, mid_p), jnp.float32).at[mask_config::2, :mid].set(W0)
    b0e = jnp.zeros((1, mid_p), jnp.float32).at[0, :mid].set(b0)

    # hidden layers: stacked (n_hidden, mid_p, mid_p)
    Whs, bhs = [], []
    for (W, b) in params[1:-1]:
        Whs.append(jnp.zeros((mid_p, mid_p), jnp.float32).at[:mid, :mid].set(W))
        bhs.append(jnp.zeros((1, mid_p), jnp.float32).at[0, :mid].set(b))
    Wh = jnp.stack(Whs).astype(jnp.bfloat16) if Whs else None
    bh = jnp.stack(bhs) if bhs else None

    # last layer: cols / bias -> x2 lane positions (delta already interleaved)
    WL, bL = params[-1]
    WLe = jnp.zeros((mid_p, w_feat), jnp.float32).at[:mid, (1 - mask_config)::2].set(WL)
    bLe = jnp.zeros((1, w_feat), jnp.float32).at[0, (1 - mask_config)::2].set(bL)

    return (W0e.astype(jnp.bfloat16), b0e, Wh, bh,
            WLe.astype(jnp.bfloat16), bLe)


# ----------------------------- wrapper -----------------------------
def additive_coupling_forward(x, log_det_J, params, mask_config, reverse=False):
    """Matches AdditiveCoupling.forward.  x: (h, w).  params: list of (W, b) with
    W shaped (d_in, d_out) (transpose of torch Linear.weight), b shaped (d_out,)."""
    h, w = x.shape
    W0, b0, Wh, bh, WL, bL = _pack_params(params, w, mask_config)
    n_hidden = 0 if Wh is None else Wh.shape[0]
    mid_p = W0.shape[1]

    sign = jnp.array([-1 if reverse else 1], jnp.int32)

    # Batch tile: big enough to amortize per-step overhead, and (when possible)
    # chosen so the parallel grid has >= 2 steps (v7x has 2 TensorCores).
    TB_MAX = 512
    if h <= 8:
        TB = h                                   # single full-batch tile
    else:
        TB = min(TB_MAX, _round_up(pl.cdiv(h, 2), 8), _round_up(h, 8))
    grid = (pl.cdiv(h, TB),)

    const2 = lambda i, s: (0, 0)
    const3 = lambda i, s: (0, 0, 0)

    # Weights/biases: constant block index -> VMEM-resident; single-buffered.
    in_specs = [
        pl.BlockSpec((TB, w), lambda i, s: (i, 0)),                         # x tile
        pl.BlockSpec((w, mid_p), const2, pipeline_mode=pl.Buffered(1)),     # W0
        pl.BlockSpec((1, mid_p), const2, pipeline_mode=pl.Buffered(1)),     # b0
    ]
    operands = [x, W0, b0]
    if n_hidden > 0:
        in_specs += [
            pl.BlockSpec((n_hidden, mid_p, mid_p), const3,
                         pipeline_mode=pl.Buffered(1)),                     # Wh
            pl.BlockSpec((n_hidden, 1, mid_p), const3,
                         pipeline_mode=pl.Buffered(1)),                     # bh
        ]
        operands += [Wh, bh]
    in_specs += [
        pl.BlockSpec((mid_p, w), const2, pipeline_mode=pl.Buffered(1)),     # WL
        pl.BlockSpec((1, w), const2, pipeline_mode=pl.Buffered(1)),         # bL
    ]
    operands += [WL, bL]

    # VMEM budget: single-buffered weights + double-buffered x/out tiles + slack.
    weight_bytes = sum(int(a.size) * jnp.dtype(a.dtype).itemsize for a in operands[1:])
    tile_bytes = int(TB) * int(w) * jnp.dtype(x.dtype).itemsize
    vmem_limit = int(weight_bytes + 4 * tile_bytes + (4 << 20))
    vmem_limit = min(max(vmem_limit, 32 << 20), 64 << 20)

    out = pl.pallas_call(
        _make_coupling_kernel(n_hidden),
        out_shape=jax.ShapeDtypeStruct((h, w), x.dtype),
        grid_spec=pltpu.PrefetchScalarGridSpec(
            num_scalar_prefetch=1,                # sign lives in SMEM
            grid=grid,
            in_specs=in_specs,
            out_specs=pl.BlockSpec((TB, w), lambda i, s: (i, 0)),
        ),
        compiler_params=pltpu.CompilerParams(
            dimension_semantics=("parallel",),
            vmem_limit_bytes=vmem_limit),
    )(sign, *operands)
    return out, log_det_J


# ----------------------------- reference (pure JAX, same precision) -----------------------------
def _mlp_ref(x1, params):
    # Mirrors kernel precision: bf16 matmul operands, f32 accumulate, f32 bias/ReLU.
    h = x1
    for i, (W, b) in enumerate(params):
        h = jnp.dot(h.astype(jnp.bfloat16), W.astype(jnp.bfloat16),
                    preferred_element_type=jnp.float32) + b.astype(jnp.float32)
        if i < len(params) - 1:
            h = jnp.maximum(h, 0.0)
    return h


def additive_coupling_ref(x, log_det_J, params, mask_config, reverse=False):
    h, w = x.shape
    x1 = x[:, mask_config::2]
    x2 = x[:, (1 - mask_config)::2]
    if reverse:
        x2 = x2 - _mlp_ref(x1, params)
    else:
        x2 = x2 + _mlp_ref(x1, params)
    if mask_config:
        x_tag = jnp.stack((x2, x1), axis=2)
    else:
        x_tag = jnp.stack((x1, x2), axis=2)
    return x_tag.reshape(h, w), log_det_J


# ----------------------------- param init (deterministic) -----------------------------
def init_params(key, in_out_dim, mid_dim, hidden):
    half = in_out_dim // 2
    dims = [half] + [mid_dim] * hidden + [half]   # hidden+1 Linear layers
    params = []
    for i in range(len(dims) - 1):
        d_in, d_out = dims[i], dims[i + 1]
        key, kw, kb = jax.random.split(key, 3)
        bound = 1.0 / jnp.sqrt(d_in)              # PyTorch nn.Linear default init
        W = jax.random.uniform(kw, (d_in, d_out), jnp.float32, -bound, bound)
        b = jax.random.uniform(kb, (d_out,), jnp.float32, -bound, bound)
        params.append((W, b))
    return params


if __name__ == "__main__":
    batch = 8
    in_out_dim = 64
    mid_dim = 32
    hidden = 3
    mask_config = 1

    key = jax.random.PRNGKey(0)
    kx, kp = jax.random.split(key)
    x = jax.random.normal(kx, (batch, in_out_dim), jnp.float32)
    log_det_J = jnp.zeros((), jnp.float32)
    params = init_params(kp, in_out_dim, mid_dim, hidden)

    # forward (sampling mode)
    y, ldj = additive_coupling_forward(x, log_det_J, params, mask_config, reverse=False)
    y = jax.block_until_ready(y)

    y_ref, _ = additive_coupling_ref(x, log_det_J, params, mask_config, reverse=False)
    assert jnp.allclose(y, y_ref, atol=1e-3, rtol=1e-3), "forward mismatch vs reference"

    # reverse (inference mode) inverts forward exactly (same bf16 m(x1) recomputed)
    x_rec, _ = additive_coupling_forward(y, ldj, params, mask_config, reverse=True)
    x_rec = jax.block_until_ready(x_rec)
    assert jnp.allclose(x_rec, x, atol=1e-4, rtol=1e-4), "reverse did not invert forward"

    # other mask_config path
    y0, _ = additive_coupling_forward(x, log_det_J, params, 0, reverse=False)
    y0_ref, _ = additive_coupling_ref(x, log_det_J, params, 0, reverse=False)
    assert jnp.allclose(jax.block_until_ready(y0), y0_ref, atol=1e-3, rtol=1e-3), \
        "forward mismatch vs reference (mask_config=0)"

    print("KERNEL_OK")
</pallas_src>

<mosaic_0001>
module attributes {stable_mosaic.version = 11 : i64} {
  func.func @kernel(%arg0: i32, %arg1: memref<1xi32, #tpu.memory_space<smem>>, %arg2: memref<8x64xf32, #tpu.memory_space<vmem>>, %arg3: memref<64x128xbf16, #tpu.memory_space<vmem>>, %arg4: memref<1x128xf32, #tpu.memory_space<vmem>>, %arg5: memref<2x128x128xbf16, #tpu.memory_space<vmem>>, %arg6: memref<2x1x128xf32, #tpu.memory_space<vmem>>, %arg7: memref<128x64xbf16, #tpu.memory_space<vmem>>, %arg8: memref<1x64xf32, #tpu.memory_space<vmem>>, %arg9: memref<8x64xf32, #tpu.memory_space<vmem>>) attributes {dimension_semantics = [#tpu.dimension_semantics<parallel>], iteration_bounds = array<i64: 1>, scalar_prefetch = 1 : i64, scratch_operands = 0 : i64, tpu.core_type = #tpu.core_type<tc>, window_params = [{transform_indices = @transform_0, window_bounds = array<i64: 8, 64>}, {pipeline_mode = #tpu.pipeline_mode<synchronous>, transform_indices = @transform_1, window_bounds = array<i64: 64, 128>}, {pipeline_mode = #tpu.pipeline_mode<synchronous>, transform_indices = @transform_2, window_bounds = array<i64: 1, 128>}, {pipeline_mode = #tpu.pipeline_mode<synchronous>, transform_indices = @transform_3, window_bounds = array<i64: 2, 128, 128>}, {pipeline_mode = #tpu.pipeline_mode<synchronous>, transform_indices = @transform_4, window_bounds = array<i64: 2, 1, 128>}, {pipeline_mode = #tpu.pipeline_mode<synchronous>, transform_indices = @transform_5, window_bounds = array<i64: 128, 64>}, {pipeline_mode = #tpu.pipeline_mode<synchronous>, transform_indices = @transform_6, window_bounds = array<i64: 1, 64>}, {transform_indices = @transform_7, window_bounds = array<i64: 8, 64>}]} {
    %c0 = arith.constant 0 : index
    %c0_0 = arith.constant 0 : index
    %0 = vector.load %arg2[%c0, %c0_0] : memref<8x64xf32, #tpu.memory_space<vmem>>, vector<8x64xf32>
    %1 = arith.truncf %0 : vector<8x64xf32> to vector<8x64xbf16>
    %c0_1 = arith.constant 0 : index
    %c0_2 = arith.constant 0 : index
    %2 = vector.load %arg3[%c0_1, %c0_2] : memref<64x128xbf16, #tpu.memory_space<vmem>>, vector<64x128xbf16>
    %cst = arith.constant dense<0.000000e+00> : vector<8x128xf32>
    %3 = tpu.matmul %1, %2, %cst {dimension_numbers = #tpu.dot_dimension_numbers<[1], [0], [0], [1], [0, 0, 1, 1], [], []>} : vector<8x64xbf16>, vector<64x128xbf16>, vector<8x128xf32> -> vector<8x128xf32>
    %c0_3 = arith.constant 0 : index
    %c0_4 = arith.constant 0 : index
    %4 = vector.load %arg4[%c0_3, %c0_4] : memref<1x128xf32, #tpu.memory_space<vmem>>, vector<1x128xf32>
    %5 = vector.broadcast %4 : vector<1x128xf32> to vector<8x128xf32>
    %6 = arith.addf %3, %5 : vector<8x128xf32>
    %cst_5 = arith.constant 0.000000e+00 : f32
    %7 = vector.broadcast %cst_5 : f32 to vector<8x128xf32>
    %8 = arith.maximumf %6, %7 : vector<8x128xf32>
    %9 = arith.truncf %8 : vector<8x128xf32> to vector<8x128xbf16>
    %c0_6 = arith.constant 0 : index
    %c0_7 = arith.constant 0 : index
    %c0_8 = arith.constant 0 : index
    %10 = vector.load %arg5[%c0_6, %c0_7, %c0_8] : memref<2x128x128xbf16, #tpu.memory_space<vmem>>, vector<1x128x128xbf16>
    %11 = vector.shape_cast %10 : vector<1x128x128xbf16> to vector<128x128xbf16>
    %cst_9 = arith.constant dense<0.000000e+00> : vector<8x128xf32>
    %12 = tpu.matmul %9, %11, %cst_9 {dimension_numbers = #tpu.dot_dimension_numbers<[1], [0], [0], [1], [0, 0, 1, 1], [], []>} : vector<8x128xbf16>, vector<128x128xbf16>, vector<8x128xf32> -> vector<8x128xf32>
    %c0_10 = arith.constant 0 : index
    %c0_11 = arith.constant 0 : index
    %c0_12 = arith.constant 0 : index
    %13 = vector.load %arg6[%c0_10, %c0_11, %c0_12] : memref<2x1x128xf32, #tpu.memory_space<vmem>>, vector<1x1x128xf32>
    %14 = vector.shape_cast %13 : vector<1x1x128xf32> to vector<1x128xf32>
    %15 = vector.broadcast %14 : vector<1x128xf32> to vector<8x128xf32>
    %16 = arith.addf %12, %15 : vector<8x128xf32>
    %cst_13 = arith.constant 0.000000e+00 : f32
    %17 = vector.broadcast %cst_13 : f32 to vector<8x128xf32>
    %18 = arith.maximumf %16, %17 : vector<8x128xf32>
    %19 = arith.truncf %18 : vector<8x128xf32> to vector<8x128xbf16>
    %c1 = arith.constant 1 : index
    %c0_14 = arith.constant 0 : index
    %c0_15 = arith.constant 0 : index
    %20 = vector.load %arg5[%c1, %c0_14, %c0_15] : memref<2x128x128xbf16, #tpu.memory_space<vmem>>, vector<1x128x128xbf16>
    %21 = vector.shape_cast %20 : vector<1x128x128xbf16> to vector<128x128xbf16>
    %cst_16 = arith.constant dense<0.000000e+00> : vector<8x128xf32>
    %22 = tpu.matmul %19, %21, %cst_16 {dimension_numbers = #tpu.dot_dimension_numbers<[1], [0], [0], [1], [0, 0, 1, 1], [], []>} : vector<8x128xbf16>, vector<128x128xbf16>, vector<8x128xf32> -> vector<8x128xf32>
    %c1_17 = arith.constant 1 : index
    %c0_18 = arith.constant 0 : index
    %c0_19 = arith.constant 0 : index
    %23 = vector.load %arg6[%c1_17, %c0_18, %c0_19] : memref<2x1x128xf32, #tpu.memory_space<vmem>>, vector<1x1x128xf32>
    %24 = vector.shape_cast %23 : vector<1x1x128xf32> to vector<1x128xf32>
    %25 = vector.broadcast %24 : vector<1x128xf32> to vector<8x128xf32>
    %26 = arith.addf %22, %25 : vector<8x128xf32>
    %cst_20 = arith.constant 0.000000e+00 : f32
    %27 = vector.broadcast %cst_20 : f32 to vector<8x128xf32>
    %28 = arith.maximumf %26, %27 : vector<8x128xf32>
    %29 = arith.truncf %28 : vector<8x128xf32> to vector<8x128xbf16>
    %c0_21 = arith.constant 0 : index
    %c0_22 = arith.constant 0 : index
    %30 = vector.load %arg7[%c0_21, %c0_22] : memref<128x64xbf16, #tpu.memory_space<vmem>>, vector<128x64xbf16>
    %cst_23 = arith.constant dense<0.000000e+00> : vector<8x64xf32>
    %31 = tpu.matmul %29, %30, %cst_23 {dimension_numbers = #tpu.dot_dimension_numbers<[1], [0], [0], [1], [0, 0, 1, 1], [], []>} : vector<8x128xbf16>, vector<128x64xbf16>, vector<8x64xf32> -> vector<8x64xf32>
    %c0_24 = arith.constant 0 : index
    %c0_25 = arith.constant 0 : index
    %32 = vector.load %arg8[%c0_24, %c0_25] : memref<1x64xf32, #tpu.memory_space<vmem>>, vector<1x64xf32>
    %33 = vector.broadcast %32 : vector<1x64xf32> to vector<8x64xf32>
    %34 = arith.addf %31, %33 : vector<8x64xf32>
    %c0_26 = arith.constant 0 : index
    %35 = memref.load %arg1[%c0_26] : memref<1xi32, #tpu.memory_space<smem>>
    %36 = arith.sitofp %35 : i32 to f32
    %37 = vector.broadcast %36 : f32 to vector<8x64xf32>
    %38 = arith.mulf %37, %34 : vector<8x64xf32>
    %39 = arith.addf %0, %38 : vector<8x64xf32>
    %c0_27 = arith.constant 0 : index
    %c0_28 = arith.constant 0 : index
    %40 = vector.load %arg9[%c0_27, %c0_28] : memref<8x64xf32, #tpu.memory_space<vmem>>, vector<8x64xf32>
    tpu.vector_store %arg9[%c0_27, %c0_28], %39 {strides = array<i32>} : memref<8x64xf32, #tpu.memory_space<vmem>>, vector<8x64xf32>,
    return
  }
  func.func @transform_0(%arg0: i32, %arg1: memref<1xi32, #tpu.memory_space<smem>>) -> (i32, i32) {
    %c0_i32 = arith.constant 0 : i32
    %c0_i32_0 = arith.constant 0 : i32
    return %arg0, %c0_i32 : i32, i32
  }
  func.func @transform_1(%arg0: i32, %arg1: memref<1xi32, #tpu.memory_space<smem>>) -> (i32, i32) {
    %c0_i32 = arith.constant 0 : i32
    %c0_i32_0 = arith.constant 0 : i32
    %c0_i32_1 = arith.constant 0 : i32
    return %c0_i32, %c0_i32_0 : i32, i32
  }
  func.func @transform_2(%arg0: i32, %arg1: memref<1xi32, #tpu.memory_space<smem>>) -> (i32, i32) {
    %c0_i32 = arith.constant 0 : i32
    %c0_i32_0 = arith.constant 0 : i32
    %c0_i32_1 = arith.constant 0 : i32
    return %c0_i32, %c0_i32_0 : i32, i32
  }
  func.func @transform_3(%arg0: i32, %arg1: memref<1xi32, #tpu.memory_space<smem>>) -> (i32, i32, i32) {
    %c0_i32 = arith.constant 0 : i32
    %c0_i32_0 = arith.constant 0 : i32
    %c0_i32_1 = arith.constant 0 : i32
    %c0_i32_2 = arith.constant 0 : i32
    return %c0_i32, %c0_i32_0, %c0_i32_1 : i32, i32, i32
  }
  func.func @transform_4(%arg0: i32, %arg1: memref<1xi32, #tpu.memory_space<smem>>) -> (i32, i32, i32) {
    %c0_i32 = arith.constant 0 : i32
    %c0_i32_0 = arith.constant 0 : i32
    %c0_i32_1 = arith.constant 0 : i32
    %c0_i32_2 = arith.constant 0 : i32
    return %c0_i32, %c0_i32_0, %c0_i32_1 : i32, i32, i32
  }
  func.func @transform_5(%arg0: i32, %arg1: memref<1xi32, #tpu.memory_space<smem>>) -> (i32, i32) {
    %c0_i32 = arith.constant 0 : i32
    %c0_i32_0 = arith.constant 0 : i32
    %c0_i32_1 = arith.constant 0 : i32
    return %c0_i32, %c0_i32_0 : i32, i32
  }
  func.func @transform_6(%arg0: i32, %arg1: memref<1xi32, #tpu.memory_space<smem>>) -> (i32, i32) {
    %c0_i32 = arith.constant 0 : i32
    %c0_i32_0 = arith.constant 0 : i32
    %c0_i32_1 = arith.constant 0 : i32
    return %c0_i32, %c0_i32_0 : i32, i32
  }
  func.func @transform_7(%arg0: i32, %arg1: memref<1xi32, #tpu.memory_space<smem>>) -> (i32, i32) {
    %c0_i32 = arith.constant 0 : i32
    %c0_i32_0 = arith.constant 0 : i32
    return %arg0, %c0_i32 : i32, i32
  }
}

</mosaic_0001>

<llo_original>
// kernel: tpu_custom_call.1
$region0: #{tpu_custom_call.1}
  #allocation0 [shape = 'u32[]', space=smem, size = 0x4, offset = 0x4, fixed_abs, tag = 'smem constant byte address 0x4 - core index']
  #allocation1 [shape = 'u32[144,128]{1,0:T(1,128)}', space=vmem, size = 0x12000, scoped, tag = 'internal scratch']
  #allocation2 [shape = 's32[1]{0}', space=sflag, size = 0x4, scoped, tag = 'scoped memory for tpu_custom_call.1']
  #allocation3 [shape = 's32[1]{0:T(128)S(6)}', space=smem, size = 0x200, scoped, tag = 'prefetched SMEM operand 0']
  %s0 = inlined_call_operand.<no memory space> [shape: s32[1], index: 0, kind: input, shape index: {}]
  %s1 = inlined_call_operand.vmem [shape: f32[8,64], index: 1, kind: input, shape index: {}]
  %s2 = inlined_call_operand.vmem [shape: bf16[64,128], index: 2, kind: input, shape index: {}]
  %s3 = inlined_call_operand.vmem [shape: f32[1,128], index: 3, kind: input, shape index: {}]
  %s4 = inlined_call_operand.hbm [shape: bf16[2,128,128], index: 4, kind: input, shape index: {}]
  %s5 = inlined_call_operand.vmem [shape: f32[2,1,128], index: 5, kind: input, shape index: {}]
  %s6 = inlined_call_operand.vmem [shape: bf16[128,64], index: 6, kind: input, shape index: {}]
  %s7 = inlined_call_operand.vmem [shape: f32[1,64], index: 7, kind: input, shape index: {}]
  %s8 = inlined_call_operand.hbm [shape: f32[8,64], index: 8, kind: output, shape index: {}]
  %s9 = sld [smem:[#allocation0]]
  $region42: #{tpu_custom_call.1} parent=0
    _
  %s11 = ssub.s32 1, %s9
  %s12 = scalar_select 0, %s11, %s9
  %13 = sst [smem:[#allocation3]] %s0
  $region1: #{tpu_custom_call.1} parent=0
    #allocation4 [shape = 'u8[65536]{0}', space=vmem, size = 0x10000, scoped, tag = 'input window, operand 4, single buffered']
    #allocation5 [shape = 's32[1]{0}', space=sflag, size = 0x4, scoped, tag = 'scoped memory for tpu_custom_call.1']
    #allocation6 [shape = 's32[1]{0}', space=sflag, size = 0x4, scoped, tag = 'scoped memory for tpu_custom_call.1']
    #allocation7 [shape = 'u8[4096]{0}', space=vmem, size = 0x1000, scoped, tag = 'output window, operand 0, single buffered']
    %14 = vsyncpa [#allocation5], 0
    %15 = vsyncpa [#allocation6], 0
    // Predicated region
    $region2: #{tpu_custom_call.1} parent=1 // pred_check
      _
    $region3: #{tpu_custom_call.1} parent=1 // pred_check_branch
      %17 = sbr.rel (0) target = $region5
    $region4: #{tpu_custom_call.1} parent=1 // pred_region
      _
    $region5: #{tpu_custom_call.1} parent=1 // pred_fallthru
      _
    // Predicated region
    $region6: #{tpu_custom_call.1} parent=1 // pred_check
      _
    $region7: #{tpu_custom_call.1} parent=1 // pred_check_branch
      %19 = sbr.rel (0) target = $region9
    $region8: #{tpu_custom_call.1} parent=1 // pred_region
      _
    $region9: #{tpu_custom_call.1} parent=1 // pred_fallthru
      _
    // Predicated region
    $region10: #{tpu_custom_call.1} parent=1 // pred_check
      _
    $region11: #{tpu_custom_call.1} parent=1 // pred_check_branch
      %21 = sbr.rel (0) target = $region13
    $region12: #{tpu_custom_call.1} parent=1 // pred_region
      _
    $region13: #{tpu_custom_call.1} parent=1 // pred_fallthru
      _
    // Predicated region
    $region14: #{tpu_custom_call.1} parent=1 // pred_check
      _
    $region15: #{tpu_custom_call.1} parent=1 // pred_check_branch
      %23 = sbr.rel (0) target = $region17
    $region16: #{tpu_custom_call.1} parent=1 // pred_region
      %s25 = ssub.s32 2048, 2048
      %26 = vsyncadd [#allocation5], %s25
      %s27 = sshll.u32 [#allocation4], 4
      %s28 = int_to_ptr.vmem [resolvable:$true] %s27
      %33 = dma.hbm_to_vmem [thread:$0]  %s4, 2048, %s28, [#allocation5], 64, 64, 4
    $region17: #{tpu_custom_call.1} parent=1 // pred_fallthru
      _
    // Predicated region
    $region18: #{tpu_custom_call.1} parent=1 // pred_check
      _
    $region19: #{tpu_custom_call.1} parent=1 // pred_check_branch
      %35 = sbr.rel (0) target = $region21
    $region20: #{tpu_custom_call.1} parent=1 // pred_region
      _
    $region21: #{tpu_custom_call.1} parent=1 // pred_fallthru
      _
    // Predicated region
    $region22: #{tpu_custom_call.1} parent=1 // pred_check
      _
    $region23: #{tpu_custom_call.1} parent=1 // pred_check_branch
      %37 = sbr.rel (0) target = $region25
    $region24: #{tpu_custom_call.1} parent=1 // pred_region
      _
    $region25: #{tpu_custom_call.1} parent=1 // pred_fallthru
      _
    // Predicated region
    $region26: #{tpu_custom_call.1} parent=1 // pred_check
      _
    $region27: #{tpu_custom_call.1} parent=1 // pred_check_branch
      %39 = sbr.rel (0) target = $region29
    $region28: #{tpu_custom_call.1} parent=1 // pred_region
      _
    $region29: #{tpu_custom_call.1} parent=1 // pred_fallthru
      _
    // Predicated region
    $region30: #{tpu_custom_call.1} parent=1 // pred_check
      _
    $region31: #{tpu_custom_call.1} parent=1 // pred_check_branch
      %41 = sbr.rel (0) target = $region33
    $region32: #{tpu_custom_call.1} parent=1 // pred_region
      %42 = dma.done [#allocation5], 2048
    $region33: #{tpu_custom_call.1} parent=1 // pred_fallthru
      _
    %v44 = vld [vmem:[%s1] sm:$0xff]
    %v45 = vpack.c.bf16 %v44, %v44
    %v46 = vld [vmem:[%s2] sm:$0xf]
    %v47 = vld [vmem:[%s2 + $0x4] sm:$0xf]
    %v48 = vld [vmem:[%s2 + $0x8] sm:$0xf]
    %v49 = vld [vmem:[%s2 + $0xc] sm:$0xf]
    %v50 = vld [vmem:[%s2 + $0x10] sm:$0xf]
    %v51 = vld [vmem:[%s2 + $0x14] sm:$0xf]
    %v52 = vld [vmem:[%s2 + $0x18] sm:$0xf]
    %v53 = vld [vmem:[%s2 + $0x1c] sm:$0xf]
    %v54 = vld [vmem:[%s3] sm:$0x1]
    %v56 = vlaneseq
    %v57 = vshrl.u32 %v56, 7
    %v58 = vsub.s32 0, %v57
    %v59 = vrot.slane %v54, %v58
    %v69 = vunpack.c.l.b16 %v46
    %v70 = vunpack.c.l.b16 %v47
    %v71 = vunpack.c.l.b16 %v48
    %v72 = vunpack.c.l.b16 %v49
    %v73 = vunpack.c.l.b16 %v50
    %v74 = vunpack.c.l.b16 %v51
    %v75 = vunpack.c.l.b16 %v52
    %v76 = vunpack.c.l.b16 %v53
    %v77 = vpack.c.b16 %v70, %v69
    %v78 = vpack.c.b16 %v72, %v71
    %v79 = vpack.c.b16 %v74, %v73
    %v80 = vpack.c.b16 %v76, %v75
    %vm85 = vcmask 523264
    %v87 = vsel %vm85, %v45, 0
    %89 = vmatprep.subr.bf16.mxu0 0
    %90 = vmatpush1.bf16.msra.mxu0 0
    %91 = vmatprep.subr.bf16.mxu0 0
    %92 = vmatpush1.bf16.msra.mxu0 0
    %93 = vmatprep.subr.bf16.mxu0 0
    %94 = vmatpush1.bf16.msra.mxu0 0
    %95 = vmatprep.subr.bf16.mxu0 0
    %96 = vmatpush1.bf16.msra.mxu0 0
    %97 = vmatprep.subr.bf16.mxu0 0
    %98 = vmatpush1.bf16.msra.mxu0 %v80
    %99 = vmatprep.subr.bf16.mxu0 0
    %100 = vmatpush1.bf16.msra.mxu0 %v79
    %101 = vmatprep.subr.bf16.mxu0 0
    %102 = vmatpush1.bf16.msra.mxu0 %v78
    %103 = vmatprep.subr.bf16.mxu0 0
    %104 = vmatpush1.bf16.msra.mxu0 %v77
    %105 = vmatprep.subr.bf16.mxu0 0
    %106 = vmatpush2.bf16.msra.mxu0 0
    %107 = vmatprep.subr.bf16.mxu0 0
    %108 = vmatpush2.bf16.msra.mxu0 0
    %109 = vmatprep.subr.bf16.mxu0 0
    %110 = vmatpush2.bf16.msra.mxu0 0
    %111 = vmatprep.subr.bf16.mxu0 0
    %112 = vmatpush2.bf16.msra.mxu0 0
    %113 = vmatprep.subr.bf16.mxu0 0
    %114 = vmatpush2.bf16.msra.mxu0 0
    %115 = vmatprep.subr.bf16.mxu0 0
    %116 = vmatpush2.bf16.msra.mxu0 0
    %117 = vmatprep.subr.bf16.mxu0 0
    %118 = vmatpush2.bf16.msra.mxu0 0
    %119 = vmatprep.subr.bf16.mxu0 0
    %120 = vmatpush2.bf16.msra.mxu0 0
    %121 = vmatprep.mubr.bf16.mxu0 0
    %122 = vmatmul.mubr.bf16.gmra.mxu0 %v87
    %v123 = vpop.f32.mrf.mxu0
    %v124 = vadd.f32 %v59, %v123
    %v125 = vpop.f32.mrf.mxu0
    %v126 = vpop.f32.mrf.mxu0
    %v127 = vpop.f32.mrf.mxu0
    %128 = vdwg.mxu0
    %v129 = vmax.f32 %v124, 0.0
    %v130 = vpack.c.bf16 %v129, %v129
    %v131 = vld [vmem:[#allocation4] sm:$0xf]
    %v132 = vld [vmem:[#allocation4 + $0x4] sm:$0xf]
    %v133 = vld [vmem:[#allocation4 + $0x8] sm:$0xf]
    %v134 = vld [vmem:[#allocation4 + $0xc] sm:$0xf]
    %v135 = vld [vmem:[#allocation4 + $0x10] sm:$0xf]
    %v136 = vld [vmem:[#allocation4 + $0x14] sm:$0xf]
    %v137 = vld [vmem:[#allocation4 + $0x18] sm:$0xf]
    %v138 = vld [vmem:[#allocation4 + $0x1c] sm:$0xf]
    %v139 = vld [vmem:[#allocation4 + $0x20] sm:$0xf]
    %v140 = vld [vmem:[#allocation4 + $0x24] sm:$0xf]
    %v141 = vld [vmem:[#allocation4 + $0x28] sm:$0xf]
    %v142 = vld [vmem:[#allocation4 + $0x2c] sm:$0xf]
    %v143 = vld [vmem:[#allocation4 + $0x30] sm:$0xf]
    %v144 = vld [vmem:[#allocation4 + $0x34] sm:$0xf]
    %v145 = vld [vmem:[#allocation4 + $0x38] sm:$0xf]
    %v146 = vld [vmem:[#allocation4 + $0x3c] sm:$0xf]
    %v147 = vld [vmem:[%s5] sm:$0x1]
    %v149 = vlaneseq
    %v150 = vshrl.u32 %v149, 7
    %v151 = vsub.s32 0, %v150
    %v152 = vrot.slane %v147, %v151
    %v170 = vunpack.c.l.b16 %v131
    %v171 = vunpack.c.l.b16 %v132
    %v172 = vunpack.c.l.b16 %v133
    %v173 = vunpack.c.l.b16 %v134
    %v174 = vunpack.c.l.b16 %v135
    %v175 = vunpack.c.l.b16 %v136
    %v176 = vunpack.c.l.b16 %v137
    %v177 = vunpack.c.l.b16 %v138
    %v178 = vunpack.c.l.b16 %v139
    %v179 = vunpack.c.l.b16 %v140
    %v180 = vunpack.c.l.b16 %v141
    %v181 = vunpack.c.l.b16 %v142
    %v182 = vunpack.c.l.b16 %v143
    %v183 = vunpack.c.l.b16 %v144
    %v184 = vunpack.c.l.b16 %v145
    %v185 = vunpack.c.l.b16 %v146
    %v186 = vpack.c.b16 %v171, %v170
    %v187 = vpack.c.b16 %v173, %v172
    %v188 = vpack.c.b16 %v175, %v174
    %v189 = vpack.c.b16 %v177, %v176
    %v190 = vpack.c.b16 %v179, %v178
    %v191 = vpack.c.b16 %v181, %v180
    %v192 = vpack.c.b16 %v183, %v182
    %v193 = vpack.c.b16 %v185, %v184
    %202 = vmatprep.subr.bf16.mxu0 0
    %203 = vmatpush1.bf16.msra.mxu0 %v193
    %204 = vmatprep.subr.bf16.mxu0 0
    %205 = vmatpush1.bf16.msra.mxu0 %v192
    %206 = vmatprep.subr.bf16.mxu0 0
    %207 = vmatpush1.bf16.msra.mxu0 %v191
    %208 = vmatprep.subr.bf16.mxu0 0
    %209 = vmatpush1.bf16.msra.mxu0 %v190
    %210 = vmatprep.subr.bf16.mxu0 0
    %211 = vmatpush1.bf16.msra.mxu0 %v189
    %212 = vmatprep.subr.bf16.mxu0 0
    %213 = vmatpush1.bf16.msra.mxu0 %v188
    %214 = vmatprep.subr.bf16.mxu0 0
    %215 = vmatpush1.bf16.msra.mxu0 %v187
    %216 = vmatprep.subr.bf16.mxu0 0
    %217 = vmatpush1.bf16.msra.mxu0 %v186
    %218 = vmatprep.subr.bf16.mxu0 0
    %219 = vmatpush2.bf16.msra.mxu0 0
    %220 = vmatprep.subr.bf16.mxu0 0
    %221 = vmatpush2.bf16.msra.mxu0 0
    %222 = vmatprep.subr.bf16.mxu0 0
    %223 = vmatpush2.bf16.msra.mxu0 0
    %224 = vmatprep.subr.bf16.mxu0 0
    %225 = vmatpush2.bf16.msra.mxu0 0
    %226 = vmatprep.subr.bf16.mxu0 0
    %227 = vmatpush2.bf16.msra.mxu0 0
    %228 = vmatprep.subr.bf16.mxu0 0
    %229 = vmatpush2.bf16.msra.mxu0 0
    %230 = vmatprep.subr.bf16.mxu0 0
    %231 = vmatpush2.bf16.msra.mxu0 0
    %232 = vmatprep.subr.bf16.mxu0 0
    %233 = vmatpush2.bf16.msra.mxu0 0
    %234 = vmatprep.mubr.bf16.mxu0 0
    %235 = vmatmul.mubr.bf16.gmra.mxu0 %v130
    %v236 = vpop.f32.mrf.mxu0
    %v237 = vadd.f32 %v152, %v236
    %v238 = vpop.f32.mrf.mxu0
    %v239 = vpop.f32.mrf.mxu0
    %v240 = vpop.f32.mrf.mxu0
    %241 = vdwg.mxu0
    %v242 = vmax.f32 %v237, 0.0
    %v243 = vpack.c.bf16 %v242, %v242
    %s244 = scalar_lea.vmem [#allocation4], 64
    %v245 = vld [vmem:[%s244] sm:$0xf]
    %v246 = vld [vmem:[%s244 + $0x4] sm:$0xf]
    %v247 = vld [vmem:[%s244 + $0x8] sm:$0xf]
    %v248 = vld [vmem:[%s244 + $0xc] sm:$0xf]
    %v249 = vld [vmem:[%s244 + $0x10] sm:$0xf]
    %v250 = vld [vmem:[%s244 + $0x14] sm:$0xf]
    %v251 = vld [vmem:[%s244 + $0x18] sm:$0xf]
    %v252 = vld [vmem:[%s244 + $0x1c] sm:$0xf]
    %v253 = vld [vmem:[%s244 + $0x20] sm:$0xf]
    %v254 = vld [vmem:[%s244 + $0x24] sm:$0xf]
    %v255 = vld [vmem:[%s244 + $0x28] sm:$0xf]
    %v256 = vld [vmem:[%s244 + $0x2c] sm:$0xf]
    %v257 = vld [vmem:[%s244 + $0x30] sm:$0xf]
    %v258 = vld [vmem:[%s244 + $0x34] sm:$0xf]
    %v259 = vld [vmem:[%s244 + $0x38] sm:$0xf]
    %v260 = vld [vmem:[%s244 + $0x3c] sm:$0xf]
    %s261 = scalar_lea.vmem %s5, 1
    %v262 = vld [vmem:[%s261] sm:$0x1]
    %v264 = vlaneseq
    %v265 = vshrl.u32 %v264, 7
    %v266 = vsub.s32 0, %v265
    %v267 = vrot.slane %v262, %v266
    %v285 = vunpack.c.l.b16 %v245
    %v286 = vunpack.c.l.b16 %v246
    %v287 = vunpack.c.l.b16 %v247
    %v288 = vunpack.c.l.b16 %v248
    %v289 = vunpack.c.l.b16 %v249
    %v290 = vunpack.c.l.b16 %v250
    %v291 = vunpack.c.l.b16 %v251
    %v292 = vunpack.c.l.b16 %v252
    %v293 = vunpack.c.l.b16 %v253
    %v294 = vunpack.c.l.b16 %v254
    %v295 = vunpack.c.l.b16 %v255
    %v296 = vunpack.c.l.b16 %v256
    %v297 = vunpack.c.l.b16 %v257
    %v298 = vunpack.c.l.b16 %v258
    %v299 = vunpack.c.l.b16 %v259
    %v300 = vunpack.c.l.b16 %v260
    %v301 = vpack.c.b16 %v286, %v285
    %v302 = vpack.c.b16 %v288, %v287
    %v303 = vpack.c.b16 %v290, %v289
    %v304 = vpack.c.b16 %v292, %v291
    %v305 = vpack.c.b16 %v294, %v293
    %v306 = vpack.c.b16 %v296, %v295
    %v307 = vpack.c.b16 %v298, %v297
    %v308 = vpack.c.b16 %v300, %v299
    %317 = vmatprep.subr.bf16.mxu0 0
    %318 = vmatpush1.bf16.msra.mxu0 %v308
    %319 = vmatprep.subr.bf16.mxu0 0
    %320 = vmatpush1.bf16.msra.mxu0 %v307
    %321 = vmatprep.subr.bf16.mxu0 0
    %322 = vmatpush1.bf16.msra.mxu0 %v306
    %323 = vmatprep.subr.bf16.mxu0 0
    %324 = vmatpush1.bf16.msra.mxu0 %v305
    %325 = vmatprep.subr.bf16.mxu0 0
    %326 = vmatpush1.bf16.msra.mxu0 %v304
    %327 = vmatprep.subr.bf16.mxu0 0
    %328 = vmatpush1.bf16.msra.mxu0 %v303
    %329 = vmatprep.subr.bf16.mxu0 0
    %330 = vmatpush1.bf16.msra.mxu0 %v302
    %331 = vmatprep.subr.bf16.mxu0 0
    %332 = vmatpush1.bf16.msra.mxu0 %v301
    %333 = vmatprep.subr.bf16.mxu0 0
    %334 = vmatpush2.bf16.msra.mxu0 0
    %335 = vmatprep.subr.bf16.mxu0 0
    %336 = vmatpush2.bf16.msra.mxu0 0
    %337 = vmatprep.subr.bf16.mxu0 0
    %338 = vmatpush2.bf16.msra.mxu0 0
    %339 = vmatprep.subr.bf16.mxu0 0
    %340 = vmatpush2.bf16.msra.mxu0 0
    %341 = vmatprep.subr.bf16.mxu0 0
    %342 = vmatpush2.bf16.msra.mxu0 0
    %343 = vmatprep.subr.bf16.mxu0 0
    %344 = vmatpush2.bf16.msra.mxu0 0
    %345 = vmatprep.subr.bf16.mxu0 0
    %346 = vmatpush2.bf16.msra.mxu0 0
    %347 = vmatprep.subr.bf16.mxu0 0
    %348 = vmatpush2.bf16.msra.mxu0 0
    %349 = vmatprep.mubr.bf16.mxu0 0
    %350 = vmatmul.mubr.bf16.gmra.mxu0 %v243
    %v351 = vpop.f32.mrf.mxu0
    %v352 = vadd.f32 %v267, %v351
    %v353 = vpop.f32.mrf.mxu0
    %v354 = vpop.f32.mrf.mxu0
    %v355 = vpop.f32.mrf.mxu0
    %356 = vdwg.mxu0
    %v357 = vmax.f32 %v352, 0.0
    %v358 = vpack.c.bf16 %v357, %v357
    %v359 = vld [vmem:[%s6] sm:$0xf]
    %v360 = vld [vmem:[%s6 + $0x4] sm:$0xf]
    %v361 = vld [vmem:[%s6 + $0x8] sm:$0xf]
    %v362 = vld [vmem:[%s6 + $0xc] sm:$0xf]
    %v363 = vld [vmem:[%s6 + $0x10] sm:$0xf]
    %v364 = vld [vmem:[%s6 + $0x14] sm:$0xf]
    %v365 = vld [vmem:[%s6 + $0x18] sm:$0xf]
    %v366 = vld [vmem:[%s6 + $0x1c] sm:$0xf]
    %v367 = vld [vmem:[%s6 + $0x20] sm:$0xf]
    %v368 = vld [vmem:[%s6 + $0x24] sm:$0xf]
    %v369 = vld [vmem:[%s6 + $0x28] sm:$0xf]
    %v370 = vld [vmem:[%s6 + $0x2c] sm:$0xf]
    %v371 = vld [vmem:[%s6 + $0x30] sm:$0xf]
    %v372 = vld [vmem:[%s6 + $0x34] sm:$0xf]
    %v373 = vld [vmem:[%s6 + $0x38] sm:$0xf]
    %v374 = vld [vmem:[%s6 + $0x3c] sm:$0xf]
    %v375 = vld [vmem:[%s7] sm:$0x1]
    %v377 = vlaneseq
    %v378 = vshrl.u32 %v377, 7
    %v379 = vsub.s32 0, %v378
    %v380 = vrot.slane %v375, %v379
    %v398 = vunpack.c.l.b16 %v359
    %v399 = vunpack.c.l.b16 %v360
    %v400 = vunpack.c.l.b16 %v361
    %v401 = vunpack.c.l.b16 %v362
    %v402 = vunpack.c.l.b16 %v363
    %v403 = vunpack.c.l.b16 %v364
    %v404 = vunpack.c.l.b16 %v365
    %v405 = vunpack.c.l.b16 %v366
    %v406 = vunpack.c.l.b16 %v367
    %v407 = vunpack.c.l.b16 %v368
    %v408 = vunpack.c.l.b16 %v369
    %v409 = vunpack.c.l.b16 %v370
    %v410 = vunpack.c.l.b16 %v371
    %v411 = vunpack.c.l.b16 %v372
    %v412 = vunpack.c.l.b16 %v373
    %v413 = vunpack.c.l.b16 %v374
    %v414 = vpack.c.b16 %v399, %v398
    %v415 = vpack.c.b16 %v401, %v400
    %v416 = vpack.c.b16 %v403, %v402
    %v417 = vpack.c.b16 %v405, %v404
    %v418 = vpack.c.b16 %v407, %v406
    %v419 = vpack.c.b16 %v409, %v408
    %v420 = vpack.c.b16 %v411, %v410
    %v421 = vpack.c.b16 %v413, %v412
    %430 = vmatprep.subr.bf16.mxu0 0
    %431 = vmatpush1.bf16.msra.mxu0 %v421
    %432 = vmatprep.subr.bf16.mxu0 0
    %433 = vmatpush1.bf16.msra.mxu0 %v420
    %434 = vmatprep.subr.bf16.mxu0 0
    %435 = vmatpush1.bf16.msra.mxu0 %v419
    %436 = vmatprep.subr.bf16.mxu0 0
    %437 = vmatpush1.bf16.msra.mxu0 %v418
    %438 = vmatprep.subr.bf16.mxu0 0
    %439 = vmatpush1.bf16.msra.mxu0 %v417
    %440 = vmatprep.subr.bf16.mxu0 0
    %441 = vmatpush1.bf16.msra.mxu0 %v416
    %442 = vmatprep.subr.bf16.mxu0 0
    %443 = vmatpush1.bf16.msra.mxu0 %v415
    %444 = vmatprep.subr.bf16.mxu0 0
    %445 = vmatpush1.bf16.msra.mxu0 %v414
    %446 = vmatprep.subr.bf16.mxu0 0
    %447 = vmatpush2.bf16.msra.mxu0 0
    %448 = vmatprep.subr.bf16.mxu0 0
    %449 = vmatpush2.bf16.msra.mxu0 0
    %450 = vmatprep.subr.bf16.mxu0 0
    %451 = vmatpush2.bf16.msra.mxu0 0
    %452 = vmatprep.subr.bf16.mxu0 0
    %453 = vmatpush2.bf16.msra.mxu0 0
    %454 = vmatprep.subr.bf16.mxu0 0
    %455 = vmatpush2.bf16.msra.mxu0 0
    %456 = vmatprep.subr.bf16.mxu0 0
    %457 = vmatpush2.bf16.msra.mxu0 0
    %458 = vmatprep.subr.bf16.mxu0 0
    %459 = vmatpush2.bf16.msra.mxu0 0
    %460 = vmatprep.subr.bf16.mxu0 0
    %461 = vmatpush2.bf16.msra.mxu0 0
    %462 = vmatprep.mubr.bf16.mxu0 0
    %463 = vmatmul.mubr.bf16.gmra.mxu0 %v358
    %v464 = vpop.f32.mrf.mxu0
    %v465 = vadd.f32 %v380, %v464
    %v466 = vpop.f32.mrf.mxu0
    %v467 = vpop.f32.mrf.mxu0
    %v468 = vpop.f32.mrf.mxu0
    %469 = vdwg.mxu0
    %s470 = sld [smem:[#allocation3]]
    %s471 = scvt.s32.f32 %s470
    %v472 = vstv %s471
    %v473 = vmul.f32 %v472, %v465
    %v474 = vadd.f32 %v44, %v473
    %475 = vst.msk [vmem:[#allocation7] sm:$0xff] %vm85, %v474
    // Predicated region
    $region34: #{tpu_custom_call.1} parent=1 // pred_check
      _
    $region35: #{tpu_custom_call.1} parent=1 // pred_check_branch
      %477 = sbr.rel (0) target = $region37
    $region36: #{tpu_custom_call.1} parent=1 // pred_region
      %s479 = ssub.s32 128, 128
      %480 = vsyncadd [#allocation6], %s479
      %s482 = sshll.u32 [#allocation7], 4
      %s483 = int_to_ptr.vmem [resolvable:$true] %s482
      %485 = dma.vmem_to_hbm [thread:$0]  %s483, 128, %s8, [#allocation6]
    $region37: #{tpu_custom_call.1} parent=1 // pred_fallthru
      _
    // Predicated region
    $region38: #{tpu_custom_call.1} parent=1 // pred_check
      _
    $region39: #{tpu_custom_call.1} parent=1 // pred_check_branch
      %487 = sbr.rel (0) target = $region41
    $region40: #{tpu_custom_call.1} parent=1 // pred_region
      %488 = dma.done [#allocation6], 128
    $region41: #{tpu_custom_call.1} parent=1 // pred_fallthru
      _
    %489 = vsyncpa [#allocation5], 1
    %490 = vsyncpa [#allocation6], 1

</llo_original>
